<compile_context>
chip_gen: v5e
topology: v5e:2x2
jax: 0.10.0
libtpu: 0.0.40
codegen_flags: <defaults>
</compile_context>

<pallas_src>
import functools
import math

import jax
import jax.numpy as jnp
from jax.experimental import pallas as pl
from jax.experimental.pallas import tpu as pltpu


_LANE = 128


def _round_up(x, m):
    return (x + m - 1) // m * m


# --------------------------- feature / hw queries ---------------------------

def _check_buffered_support():
    """Explicit feature check for pl.Buffered at spec-construction time."""
    if not hasattr(pl, "Buffered"):
        return False
    try:
        pl.BlockSpec((8, 128), lambda i: (0, 0), pipeline_mode=pl.Buffered(1))
        return True
    except Exception:   # pipeline_mode kwarg unsupported on this jax version
        return False


_HAS_BUFFERED = _check_buffered_support()


def _buffered_spec(block_shape, index_map, count):
    return pl.BlockSpec(block_shape, index_map, pipeline_mode=pl.Buffered(count))


def _tpu_vmem_capacity_bytes():
    """Generation-aware VMEM capacity; conservative fallback = v7x (64 MiB)."""
    try:
        info = pltpu.get_tpu_info()
        cap = int(getattr(info, "vmem_capacity_bytes", 0) or 0)
        if cap > 0:
            return cap
    except Exception:
        pass
    return 64 << 20


# ------------------------------ kernels -----------------------------------

def _resident_kernel(x_ref, w_ref, b_ref, o_ref, *, bf16_exp):
    """Whole vocabulary in one tile: matmul + numerically-stable log_softmax."""
    logits = jnp.dot(x_ref[...], w_ref[...],
                     preferred_element_type=jnp.float32)
    logits = logits + b_ref[...].astype(jnp.float32)
    m = jnp.max(logits, axis=-1, keepdims=True)
    shifted = logits - m
    if bf16_exp:
        p = jnp.exp(shifted.astype(jnp.bfloat16)).astype(jnp.float32)
    else:
        p = jnp.exp(shifted)
    lse = jnp.log(jnp.sum(p, axis=-1, keepdims=True))
    o_ref[...] = (shifted - lse).astype(o_ref.dtype)


def _vtiled_kernel(x_ref, w_ref, b_ref, o_ref, m_sc, l_sc, *, n_v, bf16_exp):
    """Online log-softmax over V tiles.

    Grid axis 1 has 2*n_v steps: the first n_v steps accumulate the running
    max / sum-exp (flash-style) in scratch; the last n_v steps recompute the
    logits tile and write log-probs = logits - (m + log l).
    """
    k = pl.program_id(1)

    logits = jnp.dot(x_ref[...], w_ref[...],
                     preferred_element_type=jnp.float32)
    logits = logits + b_ref[...].astype(jnp.float32)

    @pl.when(k == 0)
    def _():
        m_sc[...] = jnp.full_like(m_sc, -jnp.inf)
        l_sc[...] = jnp.zeros_like(l_sc)

    @pl.when(k < n_v)
    def _():
        m_new = jnp.maximum(m_sc[...], jnp.max(logits, axis=-1, keepdims=True))
        alpha = jnp.exp(m_sc[...] - m_new)
        shifted = logits - m_new
        if bf16_exp:
            p = jnp.exp(shifted.astype(jnp.bfloat16)).astype(jnp.float32)
        else:
            p = jnp.exp(shifted)
        l_sc[...] = alpha * l_sc[...] + jnp.sum(p, axis=-1, keepdims=True)
        m_sc[...] = m_new

    @pl.when(k >= n_v)
    def _():
        lse = m_sc[...] + jnp.log(l_sc[...])
        o_ref[...] = (logits - lse).astype(o_ref.dtype)


# ------------------------------ tile selection -----------------------------

def _pick_tm(tm_user, M, *, cap):
    if tm_user is not None:
        return max(16, _round_up(tm_user, 16))
    tm = min(cap, _round_up(max(M, 1), 16))
    # Split rows into >= 2 grid steps when there is enough work so the
    # "parallel" grid axis can shard across v7x's two TensorCores (near-free
    # elsewhere).  Round to 8 (sublane) to keep the row padding small.
    if M >= 512 and _round_up(M, tm) // tm < 2:
        tm = _round_up(-(-M // 2), 8)
    return tm


def _vtiled_vmem_est(tm, tv, D, c_bytes, o_bytes, w_bufs):
    return (w_bufs * D * tv * c_bytes      # streamed weight tiles
            + 2 * tm * D * c_bytes         # x tiles (double-buffered)
            + 2 * tm * tv * o_bytes        # out tiles
            + tm * tv * 4                  # in-kernel f32 logits temporary
            + 2 * tv * 4                   # bias tiles
            + 2 * tm * 4 * 2)              # m / l scratch


def _pick_vtiled_tiles(tv_user, tm, D, V, c_bytes, o_bytes, budget):
    """Pick (tm, tv, weight buffer count) for the V-tiled path."""
    def weight_bufs(tm_c, tv_c):
        if (_HAS_BUFFERED and D * tv_c * c_bytes >= (4 << 20)
                and _vtiled_vmem_est(tm_c, tv_c, D, c_bytes, o_bytes, 3) <= budget):
            return 3   # deeper pipeline on the dominant HBM stream
        return 2

    if tv_user is not None:
        tv = max(_LANE, _round_up(tv_user, _LANE))
        tv = min(tv, _round_up(V, _LANE))
        return tm, tv, weight_bufs(tm, tv)

    tm_candidates = [tm] + [t for t in (512, 256, 128) if t < tm]
    for tm_c in tm_candidates:
        for tv_c in (8192, 4096, 2048, 1024, 512):
            tv_eff = min(tv_c, _round_up(V, _LANE))
            if _vtiled_vmem_est(tm_c, tv_eff, D, c_bytes, o_bytes, 2) <= budget:
                return tm_c, tv_eff, weight_bufs(tm_c, tv_eff)
    return 128, _LANE, 2   # last resort for extreme D


# ------------------------------ pallas wrappers -----------------------------

def _resident_forward(x2, wc, b2, *, tm, out_dtype, D, V, c_bytes, o_bytes,
                      single_buffer_weight, vmem_cap, bf16_exp):
    M_pad = x2.shape[0]
    grid_m = M_pad // tm
    n_w_buf = 1 if single_buffer_weight else 2

    vmem_est = (n_w_buf * D * V * c_bytes      # resident weight
                + 2 * tm * D * c_bytes         # x tiles (double-buffered)
                + 2 * tm * V * o_bytes         # out tiles
                + tm * V * 4                   # in-kernel f32 logits temporary
                + 2 * V * 4)                   # bias
    vmem_limit = int(min(max(1.2 * vmem_est + (4 << 20), 32 << 20), vmem_cap))

    if single_buffer_weight:
        w_spec = _buffered_spec((D, V), lambda i: (0, 0), 1)
        b_spec = _buffered_spec((1, V), lambda i: (0, 0), 1)
    else:
        w_spec = pl.BlockSpec((D, V), lambda i: (0, 0))
        b_spec = pl.BlockSpec((1, V), lambda i: (0, 0))

    cost = pl.CostEstimate(
        flops=2 * M_pad * D * V + 5 * M_pad * V,
        transcendentals=M_pad * V,
        bytes_accessed=(M_pad * D * c_bytes + D * V * c_bytes
                        + V * 4 + M_pad * V * o_bytes),
    )

    kernel = functools.partial(_resident_kernel, bf16_exp=bf16_exp)
    return pl.pallas_call(
        kernel,
        out_shape=jax.ShapeDtypeStruct((M_pad, V), out_dtype),
        grid_spec=pltpu.PrefetchScalarGridSpec(
            num_scalar_prefetch=0,
            grid=(grid_m,),
            in_specs=[
                pl.BlockSpec((tm, D), lambda i: (i, 0)),
                w_spec,
                b_spec,
            ],
            out_specs=pl.BlockSpec((tm, V), lambda i: (i, 0)),
        ),
        compiler_params=pltpu.CompilerParams(
            dimension_semantics=("parallel",),
            vmem_limit_bytes=vmem_limit),
        cost_estimate=cost,
    )(x2, wc, b2)


def _vtiled_forward(x2, wc, b2, *, tm, tv, out_dtype, D, V_pad, c_bytes,
                    o_bytes, w_bufs, vmem_cap, bf16_exp):
    M_pad = x2.shape[0]
    grid_m = M_pad // tm
    n_v = V_pad // tv
    kernel = functools.partial(_vtiled_kernel, n_v=n_v, bf16_exp=bf16_exp)

    vmem_est = _vtiled_vmem_est(tm, tv, D, c_bytes, o_bytes, w_bufs)
    vmem_limit = int(min(max(1.2 * vmem_est + (4 << 20), 32 << 20), vmem_cap))

    if w_bufs != 2:
        w_spec = _buffered_spec((D, tv), lambda i, k: (0, k % n_v), w_bufs)
    else:
        w_spec = pl.BlockSpec((D, tv), lambda i, k: (0, k % n_v))

    cost = pl.CostEstimate(
        flops=2 * (2 * M_pad * D * V_pad) + 5 * M_pad * V_pad,   # logits x2
        transcendentals=2 * M_pad * V_pad,
        bytes_accessed=(M_pad * D * c_bytes
                        + 2 * grid_m * D * V_pad * c_bytes       # weight x2
                        + 2 * grid_m * V_pad * 4
                        + M_pad * V_pad * o_bytes),
    )

    return pl.pallas_call(
        kernel,
        out_shape=jax.ShapeDtypeStruct((M_pad, V_pad), out_dtype),
        grid_spec=pltpu.PrefetchScalarGridSpec(
            num_scalar_prefetch=0,
            grid=(grid_m, 2 * n_v),
            in_specs=[
                pl.BlockSpec((tm, D), lambda i, k: (i, 0)),
                w_spec,
                pl.BlockSpec((1, tv), lambda i, k: (0, k % n_v)),
            ],
            out_specs=pl.BlockSpec(
                (tm, tv), lambda i, k: (i, jnp.maximum(k - n_v, 0))),
            scratch_shapes=[pltpu.VMEM((tm, 1), jnp.float32),
                            pltpu.VMEM((tm, 1), jnp.float32)],
        ),
        compiler_params=pltpu.CompilerParams(
            dimension_semantics=("parallel", "arbitrary"),
            vmem_limit_bytes=vmem_limit),
        cost_estimate=cost,
    )(x2, wc, b2)


# ------------------------------ public entry --------------------------------

def generator_forward(x, w, b, *, tm=None, tv=None,
                      compute_dtype=jnp.bfloat16, out_dtype=jnp.bfloat16):
    """log_softmax(x @ w + b, axis=-1).

    x: [..., D], w: [D, V] (transpose of nn.Linear's weight), b: [V].
    Returns [..., V] log-probs in `out_dtype`.

    Note: out_dtype=bfloat16 halves the [M, V] HBM writeback but carries
    ~0.4% relative error on log-probs; use out_dtype=jnp.float32 when the
    output feeds an exact NLL / loss computation.
    """
    *lead, D = x.shape
    Dw, V = w.shape
    assert D == Dw and b.shape == (V,), "shape mismatch"

    M = math.prod(lead) if lead else 1
    c_bytes = jnp.dtype(compute_dtype).itemsize
    o_bytes = jnp.dtype(out_dtype).itemsize

    vmem_cap = _tpu_vmem_capacity_bytes()
    # ~100 MiB usable on v5e/v6e (128 MiB VMEM/TC), ~50 MiB on v7x (64 MiB).
    budget = int(vmem_cap * 0.78)

    # exp count (tm*V) dominates MXU work (2*tm*D*V) for small D -> bf16 EUP.
    bf16_exp = D <= 512

    x2 = x.reshape(M, D).astype(compute_dtype)
    wc = w.astype(compute_dtype)

    # ---------------- resident-weight path (single pass) ----------------
    tm_res = _pick_tm(tm, M, cap=512)
    single_buf_w = _HAS_BUFFERED and (D * V * c_bytes >= (8 << 20))
    w_bufs_res = 1 if single_buf_w else 2
    resident_bytes = (w_bufs_res * D * V * c_bytes     # resident weight
                      + 2 * tm_res * D * c_bytes       # x tiles
                      + 2 * tm_res * V * o_bytes       # out tiles
                      + tm_res * V * 4                 # f32 logits temporary
                      + 2 * V * 4)                     # bias
    use_resident = (tv is None) and (resident_bytes <= budget)

    if use_resident:
        M_pad = _round_up(max(M, 1), tm_res)
        if M_pad != M:
            x2 = jnp.pad(x2, ((0, M_pad - M), (0, 0)))
        b2 = b.astype(jnp.float32).reshape(1, V)
        out = _resident_forward(
            x2, wc, b2, tm=tm_res, out_dtype=out_dtype, D=D, V=V,
            c_bytes=c_bytes, o_bytes=o_bytes,
            single_buffer_weight=single_buf_w, vmem_cap=vmem_cap,
            bf16_exp=bf16_exp)
        if M_pad != M:
            out = out[:M]
        return out.reshape(*lead, V)

    # --------------- V-tiled path (online two-pass log-softmax) --------------
    # Weight is re-streamed twice per row tile -> larger tm (higher arithmetic
    # intensity, clears v6e's MXU/HBM roofline).
    tm_t = _pick_tm(tm, M, cap=1024)
    tm_sel, tv_sel, w_bufs = _pick_vtiled_tiles(
        tv, tm_t, D, V, c_bytes, o_bytes, budget)

    M_pad = _round_up(max(M, 1), tm_sel)
    V_pad = _round_up(V, tv_sel)
    if M_pad != M:
        x2 = jnp.pad(x2, ((0, M_pad - M), (0, 0)))
    b2 = b.astype(jnp.float32).reshape(1, V)
    if V_pad != V:
        # Pad the vocabulary: zero weight columns and a very negative bias so
        # padded logits contribute ~0 to the running sum-exp; padded output
        # columns are sliced off below.
        wc = jnp.pad(wc, ((0, 0), (0, V_pad - V)))
        b2 = jnp.pad(b2, ((0, 0), (0, V_pad - V)), constant_values=-1e30)

    out = _vtiled_forward(
        x2, wc, b2, tm=tm_sel, tv=tv_sel, out_dtype=out_dtype,
        D=D, V_pad=V_pad, c_bytes=c_bytes, o_bytes=o_bytes,
        w_bufs=w_bufs, vmem_cap=vmem_cap, bf16_exp=bf16_exp)
    out = out[:M, :V]
    return out.reshape(*lead, V)


def reference_forward(x, w, b, compute_dtype=jnp.bfloat16):
    *lead, D = x.shape
    V = w.shape[1]
    logits = jnp.dot(x.reshape(-1, D).astype(compute_dtype),
                     w.astype(compute_dtype),
                     preferred_element_type=jnp.float32)
    logits = logits + b.astype(jnp.float32)
    return jax.nn.log_softmax(logits, axis=-1).reshape(*lead, V)


if __name__ == "__main__":
    # Small shapes consistent with the module: d_model=32, vocab_size=128,
    # batch=2, seq=8.
    B, S, D, V = 2, 8, 32, 128

    key = jax.random.PRNGKey(0)
    kx, kw, kb, kw2, kb2, kw3, kb3 = jax.random.split(key, 7)

    bound = 1.0 / (D ** 0.5)   # mimics nn.Linear's uniform(-1/sqrt(D), 1/sqrt(D))
    w = jax.random.uniform(kw, (D, V), jnp.float32, -bound, bound)
    b = jax.random.uniform(kb, (V,), jnp.float32, -bound, bound)
    x = jax.random.normal(kx, (B, S, D), jnp.float32)

    # 1) Default path: resident-weight kernel, bf16 output (production default).
    out = jax.block_until_ready(generator_forward(x, w, b))
    ref = reference_forward(x, w, b)
    assert out.shape == (B, S, V)
    err = float(jnp.max(jnp.abs(out.astype(jnp.float32) - ref)))
    assert err < 1e-1, f"resident (bf16 out) mismatch vs reference: {err}"

    # 2) Resident kernel, f32 output for a tight numeric check.
    out32 = jax.block_until_ready(
        generator_forward(x, w, b, out_dtype=jnp.float32))
    err32 = float(jnp.max(jnp.abs(out32 - ref)))
    assert err32 < 3e-2, f"resident (f32 out) mismatch vs reference: {err32}"

    # 3) V-tiled online-log-softmax path (large-vocab fallback), exercised on a
    #    small vocab by forcing tv=128.
    V2 = 512
    w2 = jax.random.uniform(kw2, (D, V2), jnp.float32, -bound, bound)
    b2 = jax.random.uniform(kb2, (V2,), jnp.float32, -bound, bound)
    out2 = jax.block_until_ready(
        generator_forward(x, w2, b2, tv=128, out_dtype=jnp.float32))
    ref2 = reference_forward(x, w2, b2)
    assert out2.shape == (B, S, V2)
    err2 = float(jnp.max(jnp.abs(out2 - ref2)))
    assert err2 < 3e-2, f"v-tiled kernel mismatch vs reference: {err2}"

    # 4) V-tiled path with a vocab NOT divisible by the tile (exercises the
    #    padded-column / -1e30 bias handling).
    V3 = 320
    w3 = jax.random.uniform(kw3, (D, V3), jnp.float32, -bound, bound)
    b3 = jax.random.uniform(kb3, (V3,), jnp.float32, -bound, bound)
    out3 = jax.block_until_ready(
        generator_forward(x, w3, b3, tv=256, out_dtype=jnp.float32))
    ref3 = reference_forward(x, w3, b3)
    assert out3.shape == (B, S, V3)
    err3 = float(jnp.max(jnp.abs(out3 - ref3)))
    assert err3 < 3e-2, f"padded v-tiled kernel mismatch vs reference: {err3}"

    print("KERNEL_OK")
</pallas_src>

<mosaic_0001>
module attributes {stable_mosaic.version = 11 : i64} {
  func.func @_resident_kernel(%arg0: i32, %arg1: memref<16x32xbf16, #tpu.memory_space<vmem>>, %arg2: memref<32x128xbf16, #tpu.memory_space<vmem>>, %arg3: memref<1x128xf32, #tpu.memory_space<vmem>>, %arg4: memref<16x128xbf16, #tpu.memory_space<vmem>>) attributes {dimension_semantics = [#tpu.dimension_semantics<parallel>], iteration_bounds = array<i64: 1>, scalar_prefetch = 0 : i64, scratch_operands = 0 : i64, tpu.core_type = #tpu.core_type<tc>, window_params = [{transform_indices = @transform_0, window_bounds = array<i64: 16, 32>}, {pipeline_mode = #tpu.pipeline_mode<synchronous>, transform_indices = @transform_1, window_bounds = array<i64: 32, 128>}, {pipeline_mode = #tpu.pipeline_mode<synchronous>, transform_indices = @transform_2, window_bounds = array<i64: 1, 128>}, {transform_indices = @transform_3, window_bounds = array<i64: 16, 128>}]} {
    %c0 = arith.constant 0 : index
    %c0_0 = arith.constant 0 : index
    %0 = vector.load %arg1[%c0, %c0_0] : memref<16x32xbf16, #tpu.memory_space<vmem>>, vector<16x32xbf16>
    %c0_1 = arith.constant 0 : index
    %c0_2 = arith.constant 0 : index
    %1 = vector.load %arg2[%c0_1, %c0_2] : memref<32x128xbf16, #tpu.memory_space<vmem>>, vector<32x128xbf16>
    %cst = arith.constant dense<0.000000e+00> : vector<16x128xf32>
    %2 = tpu.matmul %0, %1, %cst {dimension_numbers = #tpu.dot_dimension_numbers<[1], [0], [0], [1], [0, 0, 1, 1], [], []>} : vector<16x32xbf16>, vector<32x128xbf16>, vector<16x128xf32> -> vector<16x128xf32>
    %c0_3 = arith.constant 0 : index
    %c0_4 = arith.constant 0 : index
    %3 = vector.load %arg3[%c0_3, %c0_4] : memref<1x128xf32, #tpu.memory_space<vmem>>, vector<1x128xf32>
    %4 = vector.broadcast %3 : vector<1x128xf32> to vector<16x128xf32>
    %5 = arith.addf %2, %4 : vector<16x128xf32>
    %cst_5 = arith.constant dense<0xFF800000> : vector<16xf32>
    %6 = vector.multi_reduction <maximumf>, %5, %cst_5 [1] : vector<16x128xf32> to vector<16xf32>
    %7 = vector.shape_cast %6 : vector<16xf32> to vector<16x1xf32>
    %8 = vector.broadcast %7 : vector<16x1xf32> to vector<16x128xf32>
    %9 = arith.subf %5, %8 : vector<16x128xf32>
    %10 = arith.truncf %9 : vector<16x128xf32> to vector<16x128xbf16>
    %11 = math.exp %10 : vector<16x128xbf16>
    %12 = arith.extf %11 : vector<16x128xbf16> to vector<16x128xf32>
    %cst_6 = arith.constant dense<0.000000e+00> : vector<16xf32>
    %13 = vector.multi_reduction <add>, %12, %cst_6 [1] : vector<16x128xf32> to vector<16xf32>
    %14 = vector.shape_cast %13 : vector<16xf32> to vector<16x1xf32>
    %15 = math.log %14 : vector<16x1xf32>
    %16 = vector.broadcast %15 : vector<16x1xf32> to vector<16x128xf32>
    %17 = arith.subf %9, %16 : vector<16x128xf32>
    %18 = arith.truncf %17 : vector<16x128xf32> to vector<16x128xbf16>
    %c0_7 = arith.constant 0 : index
    %c0_8 = arith.constant 0 : index
    %19 = vector.load %arg4[%c0_7, %c0_8] : memref<16x128xbf16, #tpu.memory_space<vmem>>, vector<16x128xbf16>
    tpu.vector_store %arg4[%c0_7, %c0_8], %18 {strides = array<i32>} : memref<16x128xbf16, #tpu.memory_space<vmem>>, vector<16x128xbf16>,
    return
  }
  func.func @transform_0(%arg0: i32) -> (i32, i32) {
    %c0_i32 = arith.constant 0 : i32
    %c0_i32_0 = arith.constant 0 : i32
    return %arg0, %c0_i32 : i32, i32
  }
  func.func @transform_1(%arg0: i32) -> (i32, i32) {
    %c0_i32 = arith.constant 0 : i32
    %c0_i32_0 = arith.constant 0 : i32
    %c0_i32_1 = arith.constant 0 : i32
    return %c0_i32, %c0_i32_0 : i32, i32
  }
  func.func @transform_2(%arg0: i32) -> (i32, i32) {
    %c0_i32 = arith.constant 0 : i32
    %c0_i32_0 = arith.constant 0 : i32
    %c0_i32_1 = arith.constant 0 : i32
    return %c0_i32, %c0_i32_0 : i32, i32
  }
  func.func @transform_3(%arg0: i32) -> (i32, i32) {
    %c0_i32 = arith.constant 0 : i32
    %c0_i32_0 = arith.constant 0 : i32
    return %arg0, %c0_i32 : i32, i32
  }
}

</mosaic_0001>

<llo_original>
// kernel: tpu_custom_call.1
$region0: #{tpu_custom_call.1}
  #allocation0 [shape = 'u32[]', space=smem, size = 0x4, offset = 0x4, fixed_abs, tag = 'smem constant byte address 0x4 - core index']
  #allocation1 [shape = 'u32[72,128]{1,0:T(1,128)}', space=vmem, size = 0x9000, scoped, tag = 'internal scratch']
  %s0 = inlined_call_operand.hbm [shape: bf16[16,32], index: 0, kind: input, shape index: {}]
  %s1 = inlined_call_operand.hbm [shape: bf16[32,128], index: 1, kind: input, shape index: {}]
  %s2 = inlined_call_operand.vmem [shape: f32[1,128], index: 2, kind: input, shape index: {}]
  %s3 = inlined_call_operand.hbm [shape: bf16[16,128], index: 3, kind: output, shape index: {}]
  %s4 = sld [smem:[#allocation0]]
  $region30: #{tpu_custom_call.1} parent=0
    _
  %s6 = ssub.s32 1, %s4
  %s7 = scalar_select 0, %s6, %s4
  $region1: #{tpu_custom_call.1} parent=0
    #allocation2 [shape = 'u8[4096]{0}', space=vmem, size = 0x1000, scoped, tag = 'input window, operand 0, single buffered']
    #allocation3 [shape = 's32[1]{0}', space=sflag, size = 0x4, scoped, tag = 'scoped memory for tpu_custom_call.1']
    #allocation4 [shape = 's32[1]{0}', space=sflag, size = 0x4, scoped, tag = 'scoped memory for tpu_custom_call.1']
    #allocation5 [shape = 'u8[8192]{0}', space=vmem, size = 0x2000, scoped, tag = 'input window, operand 1, single buffered']
    #allocation6 [shape = 's32[1]{0}', space=sflag, size = 0x4, scoped, tag = 'scoped memory for tpu_custom_call.1']
    #allocation7 [shape = 'u8[4096]{0}', space=vmem, size = 0x1000, scoped, tag = 'output window, operand 0, single buffered']
    %8 = vsyncpa [#allocation3], 0
    %9 = vsyncpa [#allocation6], 0
    %10 = vsyncpa [#allocation4], 0
    // Predicated region
    $region2: #{tpu_custom_call.1} parent=1 // pred_check
      _
    $region3: #{tpu_custom_call.1} parent=1 // pred_check_branch
      %12 = sbr.rel (0) target = $region5
    $region4: #{tpu_custom_call.1} parent=1 // pred_region
      %14 = vsyncadd [#allocation3], 0
      %s15 = sshll.u32 %s0, 4
      %s16 = int_to_ptr.hbm [resolvable:$true] %s15
      %s17 = sshll.u32 [#allocation2], 4
      %s18 = int_to_ptr.vmem [resolvable:$true] %s17
      %23 = dma.hbm_to_vmem [thread:$0]  %s16, 128, %s18, [#allocation3], 64, 64, 4
    $region5: #{tpu_custom_call.1} parent=1 // pred_fallthru
      _
    // Predicated region
    $region6: #{tpu_custom_call.1} parent=1 // pred_check
      _
    $region7: #{tpu_custom_call.1} parent=1 // pred_check_branch
      %25 = sbr.rel (0) target = $region9
    $region8: #{tpu_custom_call.1} parent=1 // pred_region
      %27 = vsyncadd [#allocation6], 0
      %s28 = sshll.u32 %s1, 4
      %s29 = int_to_ptr.hbm [resolvable:$true] %s28
      %s30 = sshll.u32 [#allocation5], 4
      %s31 = int_to_ptr.vmem [resolvable:$true] %s30
      %36 = dma.hbm_to_vmem [thread:$0]  %s29, 256, %s31, [#allocation6], 64, 64, 4
    $region9: #{tpu_custom_call.1} parent=1 // pred_fallthru
      _
    // Predicated region
    $region10: #{tpu_custom_call.1} parent=1 // pred_check
      _
    $region11: #{tpu_custom_call.1} parent=1 // pred_check_branch
      %38 = sbr.rel (0) target = $region13
    $region12: #{tpu_custom_call.1} parent=1 // pred_region
      _
    $region13: #{tpu_custom_call.1} parent=1 // pred_fallthru
      _
    // Predicated region
    $region14: #{tpu_custom_call.1} parent=1 // pred_check
      _
    $region15: #{tpu_custom_call.1} parent=1 // pred_check_branch
      %40 = sbr.rel (0) target = $region17
    $region16: #{tpu_custom_call.1} parent=1 // pred_region
      %42 = dma.done [#allocation3], 128
    $region17: #{tpu_custom_call.1} parent=1 // pred_fallthru
      _
    // Predicated region
    $region18: #{tpu_custom_call.1} parent=1 // pred_check
      _
    $region19: #{tpu_custom_call.1} parent=1 // pred_check_branch
      %44 = sbr.rel (0) target = $region21
    $region20: #{tpu_custom_call.1} parent=1 // pred_region
      %46 = dma.done [#allocation6], 256
    $region21: #{tpu_custom_call.1} parent=1 // pred_fallthru
      _
    %v48 = vld [vmem:[#allocation2] sm:$0xf]
    %v49 = vld [vmem:[#allocation2 + $0x4] sm:$0xf]
    %v50 = vld [vmem:[#allocation5] sm:$0xf]
    %v51 = vld [vmem:[#allocation5 + $0x4] sm:$0xf]
    %v52 = vld [vmem:[#allocation5 + $0x8] sm:$0xf]
    %v53 = vld [vmem:[#allocation5 + $0xc] sm:$0xf]
    %v54 = vld [vmem:[%s2] sm:$0x1]
    %v56 = vperm.slane %v54, 0
    %v60 = vunpack.c.l.b16 %v48
    %v61 = vunpack.c.l.b16 %v49
    %v62 = vpack.c.b16 %v61, %v60
    %v67 = vunpack.c.l.b16 %v50
    %v68 = vunpack.c.l.b16 %v51
    %v69 = vunpack.c.l.b16 %v52
    %v70 = vunpack.c.l.b16 %v53
    %v71 = vpack.c.b16 %v68, %v67
    %v72 = vpack.c.b16 %v70, %v69
    %vm75 = vcmask 261120
    %v77 = vsel %vm75, %v62, 0
    %79 = vmatpush.bf16.msra.mxu0 0
    %80 = vmatpush.bf16.msra.mxu0 0
    %81 = vmatpush.bf16.msra.mxu0 0
    %82 = vmatpush.bf16.msra.mxu0 0
    %83 = vmatpush.bf16.msra.mxu0 0
    %84 = vmatpush.bf16.msra.mxu0 0
    %85 = vmatpush.bf16.msra.mxu0 %v72
    %86 = vmatpush.bf16.msra.mxu0 %v71
    %87 = vmatmul.bf16.gmra.mxu0 %v77
    %v88 = vpop.f32.mrf.mxu0
    %v89 = vadd.f32 %v56, %v88
    %v90 = vpop.f32.mrf.mxu0
    %v91 = vadd.f32 %v56, %v90
    %92 = vdwg.mxu0
    %93 = vmax.xlane.f32.xlu0 %v89
    %v94 = vpop.xlane.xlu0 %93
    %95 = vmax.xlane.f32.xlu0 %v91
    %v96 = vpop.xlane.xlu0 %95
    %v97 = vsub.f32 %v89, %v94
    %v98 = vsub.f32 %v91, %v96
    %v99 = vpack.c.bf16 %v98, %v97
    %v100 = vunpack.c.l.bf16 %v99
    %v101 = vunpack.c.h.bf16 %v99
    %v102 = vmul.f32 %v100, 1.442695
    %v103 = vpow.pop %v102
    %v104 = vmul.f32 %v101, 1.442695
    %v105 = vpow.pop %v104
    %v106 = vpack.c.bf16 %v105, %v103
    %v107 = vunpack.c.l.bf16 %v106
    %v108 = vunpack.c.h.bf16 %v106
    %109 = vadd.xlane.f32.xlu0 %v107
    %v110 = vpop.xlane.xlu0 %109
    %111 = vadd.xlane.f32.xlu0 %v108
    %v112 = vpop.xlane.xlu0 %111
    %v113 = vlog2.pop %v110
    %v114 = vmul.f32 %v113, 0.6931472
    %v115 = vlog2.pop %v112
    %v116 = vmul.f32 %v115, 0.6931472
    %v117 = vsub.f32 %v97, %v114
    %v118 = vsub.f32 %v98, %v116
    %v119 = vpack.c.bf16 %v117, %v117
    %v120 = vpack.c.bf16 %v118, %v118
    %121 = vst [vmem:[#allocation7] sm:$0xf] %v119
    %122 = vst [vmem:[#allocation7 + $0x4] sm:$0xf] %v120
    // Predicated region
    $region22: #{tpu_custom_call.1} parent=1 // pred_check
      _
    $region23: #{tpu_custom_call.1} parent=1 // pred_check_branch
      %124 = sbr.rel (0) target = $region25
    $region24: #{tpu_custom_call.1} parent=1 // pred_region
      %126 = vsyncadd [#allocation4], 0
      %s127 = sshll.u32 [#allocation7], 4
      %s128 = int_to_ptr.vmem [resolvable:$true] %s127
      %s129 = sshll.u32 %s3, 4
      %s130 = int_to_ptr.hbm [resolvable:$true] %s129
      %135 = dma.vmem_to_hbm [thread:$0]  %s128, 128, %s130, [#allocation4], 64, 64, 4
    $region25: #{tpu_custom_call.1} parent=1 // pred_fallthru
      _
    // Predicated region
    $region26: #{tpu_custom_call.1} parent=1 // pred_check
      _
    $region27: #{tpu_custom_call.1} parent=1 // pred_check_branch
      %137 = sbr.rel (0) target = $region29
    $region28: #{tpu_custom_call.1} parent=1 // pred_region
      %139 = dma.done [#allocation4], 128
    $region29: #{tpu_custom_call.1} parent=1 // pred_fallthru
      _
    %140 = vsyncpa [#allocation3], 1
    %141 = vsyncpa [#allocation6], 1
    %142 = vsyncpa [#allocation4], 1

</llo_original>
